<compile_context>
chip_gen: v7x
topology: tpu7x:2x2x1
jax: 0.10.0
libtpu: 0.0.40
codegen_flags: <defaults>
</compile_context>

<pallas_src>
import numpy as np
import jax
import jax.numpy as jnp
from jax.experimental import pallas as pl
from jax.experimental.pallas import tpu as pltpu


def get_b_matrix(tem_size: int = 60, time_window_size: int = 12) -> jnp.ndarray:
    A = np.zeros((tem_size, tem_size), dtype=np.float64)
    for i in range(time_window_size):
        for j in range(time_window_size):
            A[i, j] = 1
            A[i + time_window_size, j + time_window_size] = 1
            A[i + 2 * time_window_size, j + 2 * time_window_size] = 1
    for i in range(2 * time_window_size):
        for j in range(2 * time_window_size):
            A[i + 3 * time_window_size, j + 3 * time_window_size] = 1
    # every softmax row must keep at least one unmasked entry
    assert A.sum(axis=1).min() > 0
    B = -10000000000000.0 * (1.0 - A)
    return jnp.asarray(B, dtype=jnp.float32)


def tatt_kernel(st_ref, s_ref, m_ref, bp_ref, v_ref, gamma_ref, beta_ref,
                mask_ref, out_ref):
    B, T, K = st_ref.shape
    eps = 1e-5
    inv_bt = 1.0 / (B * T)

    # ---- shared operands: loaded / broadcast ONCE (hoisted) ----------------
    st = st_ref[...]                                  # (B, T, K) bf16
    s = s_ref[...]                                    # (B, K, T) bf16
    m3 = jnp.broadcast_to(m_ref[...], (B, K, K))      # (B, K, K) bf16 (fused weight)
    v3 = jnp.broadcast_to(v_ref[...], (B, T, T))      # (B, T, T) bf16
    bias = bp_ref[...]                                # (T, T) f32
    mask = mask_ref[...]                              # (T, T) f32
    gamma = gamma_ref[...]                            # (1, T) f32
    beta = beta_ref[...]                              # (1, T) f32

    # ---- batched matmul chain: one MXU pass per stage across all B ---------
    # p[b] = S[b]^T @ M                                  (B, T, K)
    p = jnp.einsum('btk,bkj->btj', st, m3,
                   preferred_element_type=jnp.float32)
    # h[b] = p[b] @ S[b]                                 (B, T, T)
    h = jnp.einsum('btk,bku->btu', p.astype(jnp.bfloat16), s,
                   preferred_element_type=jnp.float32)
    l0 = jax.nn.sigmoid(h + bias)                      # (B, T, T) f32
    # l1[b] = v @ l0[b]                                  (B, T, T)
    l1 = jnp.einsum('bts,bsu->btu', v3, l0.astype(jnp.bfloat16),
                    preferred_element_type=jnp.float32)

    # ---- BatchNorm1d (training-mode batch stats), per last-dim column ------
    sum_x = jnp.sum(jnp.sum(l1, axis=0), axis=0, keepdims=True)        # (1, T)
    sum_x2 = jnp.sum(jnp.sum(l1 * l1, axis=0), axis=0, keepdims=True)  # (1, T)
    mean = sum_x * inv_bt                               # (1, T)
    # biased variance, clamped against f32 cancellation for low-var columns
    var = jnp.maximum(sum_x2 * inv_bt - mean * mean, 0.0)
    scale = jax.lax.rsqrt(var + eps) * gamma            # (1, T)
    shift_plus_mask = (beta - mean * scale) + mask      # (T, T), hoisted

    # ---- masked softmax over the last dim, one pass over the whole slab ----
    z = l1 * scale + shift_plus_mask                    # (B, T, T)
    z = z - jnp.max(z, axis=-1, keepdims=True)
    e = jnp.exp(z)
    inv = pl.reciprocal(jnp.sum(e, axis=-1, keepdims=True), approx=True)
    out_ref[...] = e * inv


def tatt_forward(seq, w1, w2, w, bp, v, gamma, beta, mask):
    B, C, N, T = seq.shape
    K = C * N
    # Fused bilinear weight: M[c*N+n, c'*N+n'] = w1[c] * w[n, c'] * w2[n']
    m = (w1[:, None, None, None] * w[None, :, :, None] *
         w2[None, None, None, :]).reshape(K, K)
    # Matmul operands pre-cast to bf16 in the wrapper (halves DMA bytes,
    # no in-kernel cast traffic).  s is a free reshape; st is layout plumbing.
    s3 = seq.reshape(B, K, T).astype(jnp.bfloat16)               # (B, C*N, T)
    st3 = jnp.transpose(seq.reshape(B, K, T), (0, 2, 1)).astype(jnp.bfloat16)
    m_bf = m.astype(jnp.bfloat16)
    v_bf = v.astype(jnp.bfloat16)

    vmem = pl.BlockSpec(memory_space=pltpu.MemorySpace.VMEM)
    return pl.pallas_call(
        tatt_kernel,
        out_shape=jax.ShapeDtypeStruct((B, T, T), jnp.float32),
        in_specs=[vmem] * 8,
        out_specs=vmem,
    )(st3, s3, m_bf, bp, v_bf, gamma, beta, mask)


def tatt_ref(seq, w1, w2, w, bp, v, gamma, beta, mask, eps=1e-5):
    """Pure-JAX reference mirroring the PyTorch forward (f32)."""
    f1 = jnp.einsum('c,bcnt->btn', w1, seq)
    f2 = jnp.einsum('n,bcnt->bct', w2, seq)
    g = jnp.einsum('btn,nc->btc', f1, w)
    h = jnp.einsum('btc,bcu->btu', g, f2)
    l0 = jax.nn.sigmoid(h + bp)
    l1 = jnp.einsum('ts,bsu->btu', v, l0)
    mean = jnp.mean(l1, axis=(0, 1), keepdims=True)
    var = jnp.mean((l1 - mean) ** 2, axis=(0, 1), keepdims=True)
    x = (l1 - mean) * jax.lax.rsqrt(var + eps) * gamma[0] + beta[0]
    return jax.nn.softmax(x + mask, axis=-1)


if __name__ == "__main__":
    batch, c_in, num_nodes, tem_size = 2, 4, 16, 60  # tem_size=60 fixed by B_matrix default

    key = jax.random.PRNGKey(0)
    k1, k2, k3, k4, k5 = jax.random.split(key, 5)

    # Deterministic synthetic parameters (shapes from the module __init__).
    b1 = 1.0 / np.sqrt(c_in)
    w1 = jax.random.uniform(k1, (c_in,), jnp.float32, -b1, b1)           # conv1 weight (1,c_in,1,1)
    b2 = 1.0 / np.sqrt(num_nodes)
    w2 = jax.random.uniform(k2, (num_nodes,), jnp.float32, -b2, b2)      # conv2 weight (1,num_nodes,1,1)
    xw = float(np.sqrt(6.0 / (num_nodes + c_in)))
    w = jax.random.uniform(k3, (num_nodes, c_in), jnp.float32, -xw, xw)  # xavier_uniform
    xv = float(np.sqrt(6.0 / (2 * tem_size)))
    v = jax.random.uniform(k4, (tem_size, tem_size), jnp.float32, -xv, xv)
    bp = jnp.zeros((tem_size, tem_size), jnp.float32)
    gamma = jnp.ones((1, tem_size), jnp.float32)     # BN weight
    beta = jnp.zeros((1, tem_size), jnp.float32)     # BN bias
    mask = get_b_matrix(tem_size, 12)

    seq = jax.random.normal(k5, (batch, c_in, num_nodes, tem_size), jnp.float32)

    coefs = tatt_forward(seq, w1, w2, w, bp, v, gamma, beta, mask)
    coefs = jax.block_until_ready(coefs)

    # Sanity checks: finite, rows sum to one, matches pure-JAX f32 reference.
    # (bf16 matmuls + approx reciprocal -> documented looser tolerance.)
    row_sums = jnp.sum(coefs, axis=-1)
    assert jnp.all(jnp.isfinite(coefs))
    assert jnp.allclose(row_sums, 1.0, atol=1e-2), float(jnp.max(jnp.abs(row_sums - 1.0)))
    ref = tatt_ref(seq, w1, w2, w, bp, v, gamma, beta, mask)
    assert jnp.allclose(coefs, ref, atol=3e-2, rtol=3e-2), float(jnp.max(jnp.abs(coefs - ref)))

    print("KERNEL_OK")
</pallas_src>

<mosaic_0001>
module attributes {stable_mosaic.version = 11 : i64} {
  func.func @tatt_kernel(%arg0: memref<2x60x64xbf16, #tpu.memory_space<vmem>>, %arg1: memref<2x64x60xbf16, #tpu.memory_space<vmem>>, %arg2: memref<64x64xbf16, #tpu.memory_space<vmem>>, %arg3: memref<60x60xf32, #tpu.memory_space<vmem>>, %arg4: memref<60x60xbf16, #tpu.memory_space<vmem>>, %arg5: memref<1x60xf32, #tpu.memory_space<vmem>>, %arg6: memref<1x60xf32, #tpu.memory_space<vmem>>, %arg7: memref<60x60xf32, #tpu.memory_space<vmem>>, %arg8: memref<2x60x60xf32, #tpu.memory_space<vmem>>) attributes {dimension_semantics = [], scalar_prefetch = 0 : i64, scratch_operands = 0 : i64, tpu.core_type = #tpu.core_type<tc>} {
    %c0 = arith.constant 0 : index
    %c0_0 = arith.constant 0 : index
    %c0_1 = arith.constant 0 : index
    %0 = vector.load %arg0[%c0, %c0_0, %c0_1] : memref<2x60x64xbf16, #tpu.memory_space<vmem>>, vector<2x60x64xbf16>
    %c0_2 = arith.constant 0 : index
    %c0_3 = arith.constant 0 : index
    %c0_4 = arith.constant 0 : index
    %1 = vector.load %arg1[%c0_2, %c0_3, %c0_4] : memref<2x64x60xbf16, #tpu.memory_space<vmem>>, vector<2x64x60xbf16>
    %c0_5 = arith.constant 0 : index
    %c0_6 = arith.constant 0 : index
    %2 = vector.load %arg2[%c0_5, %c0_6] : memref<64x64xbf16, #tpu.memory_space<vmem>>, vector<64x64xbf16>
    %3 = vector.shape_cast %2 : vector<64x64xbf16> to vector<1x64x64xbf16>
    %4 = vector.broadcast %3 : vector<1x64x64xbf16> to vector<2x64x64xbf16>
    %c0_7 = arith.constant 0 : index
    %c0_8 = arith.constant 0 : index
    %5 = vector.load %arg4[%c0_7, %c0_8] : memref<60x60xbf16, #tpu.memory_space<vmem>>, vector<60x60xbf16>
    %6 = vector.shape_cast %5 : vector<60x60xbf16> to vector<1x60x60xbf16>
    %7 = vector.broadcast %6 : vector<1x60x60xbf16> to vector<2x60x60xbf16>
    %c0_9 = arith.constant 0 : index
    %c0_10 = arith.constant 0 : index
    %8 = vector.load %arg3[%c0_9, %c0_10] : memref<60x60xf32, #tpu.memory_space<vmem>>, vector<60x60xf32>
    %c0_11 = arith.constant 0 : index
    %c0_12 = arith.constant 0 : index
    %9 = vector.load %arg7[%c0_11, %c0_12] : memref<60x60xf32, #tpu.memory_space<vmem>>, vector<60x60xf32>
    %c0_13 = arith.constant 0 : index
    %c0_14 = arith.constant 0 : index
    %10 = vector.load %arg5[%c0_13, %c0_14] : memref<1x60xf32, #tpu.memory_space<vmem>>, vector<1x60xf32>
    %c0_15 = arith.constant 0 : index
    %c0_16 = arith.constant 0 : index
    %11 = vector.load %arg6[%c0_15, %c0_16] : memref<1x60xf32, #tpu.memory_space<vmem>>, vector<1x60xf32>
    "tpu.trace_start"() <{level = 10 : i32, message = "btk,bkj->btj"}> : () -> ()
    %cst = arith.constant dense<0.000000e+00> : vector<2x60x64xf32>
    %12 = tpu.matmul %0, %4, %cst {dimension_numbers = #tpu.dot_dimension_numbers<[2], [1], [1], [2], [0, 0, 0, 1, 1, 2], [0], [0]>} : vector<2x60x64xbf16>, vector<2x64x64xbf16>, vector<2x60x64xf32> -> vector<2x60x64xf32>
    "tpu.trace_stop"() : () -> ()
    %13 = arith.truncf %12 : vector<2x60x64xf32> to vector<2x60x64xbf16>
    "tpu.trace_start"() <{level = 10 : i32, message = "btk,bku->btu"}> : () -> ()
    %cst_17 = arith.constant dense<0.000000e+00> : vector<2x60x60xf32>
    %14 = tpu.matmul %13, %1, %cst_17 {dimension_numbers = #tpu.dot_dimension_numbers<[2], [1], [1], [2], [0, 0, 0, 1, 1, 2], [0], [0]>} : vector<2x60x64xbf16>, vector<2x64x60xbf16>, vector<2x60x60xf32> -> vector<2x60x60xf32>
    "tpu.trace_stop"() : () -> ()
    %15 = vector.shape_cast %8 : vector<60x60xf32> to vector<1x60x60xf32>
    %16 = vector.broadcast %15 : vector<1x60x60xf32> to vector<2x60x60xf32>
    %17 = arith.addf %14, %16 : vector<2x60x60xf32>
    %18 = arith.negf %17 : vector<2x60x60xf32>
    %19 = math.exp %18 : vector<2x60x60xf32>
    %cst_18 = arith.constant 1.000000e+00 : f32
    %20 = vector.broadcast %cst_18 : f32 to vector<2x60x60xf32>
    %21 = arith.addf %20, %19 : vector<2x60x60xf32>
    %22 = arith.divf %20, %21 : vector<2x60x60xf32>
    %23 = arith.truncf %22 : vector<2x60x60xf32> to vector<2x60x60xbf16>
    "tpu.trace_start"() <{level = 10 : i32, message = "bts,bsu->btu"}> : () -> ()
    %cst_19 = arith.constant dense<0.000000e+00> : vector<2x60x60xf32>
    %24 = tpu.matmul %7, %23, %cst_19 {dimension_numbers = #tpu.dot_dimension_numbers<[2], [1], [1], [2], [0, 0, 0, 1, 1, 2], [0], [0]>} : vector<2x60x60xbf16>, vector<2x60x60xbf16>, vector<2x60x60xf32> -> vector<2x60x60xf32>
    "tpu.trace_stop"() : () -> ()
    %cst_20 = arith.constant dense<0.000000e+00> : vector<60x60xf32>
    %25 = vector.multi_reduction <add>, %24, %cst_20 [0] : vector<2x60x60xf32> to vector<60x60xf32>
    %cst_21 = arith.constant dense<0.000000e+00> : vector<60xf32>
    %26 = vector.multi_reduction <add>, %25, %cst_21 [0] : vector<60x60xf32> to vector<60xf32>
    %27 = vector.shape_cast %26 : vector<60xf32> to vector<1x60xf32>
    %28 = arith.mulf %24, %24 : vector<2x60x60xf32>
    %cst_22 = arith.constant dense<0.000000e+00> : vector<60x60xf32>
    %29 = vector.multi_reduction <add>, %28, %cst_22 [0] : vector<2x60x60xf32> to vector<60x60xf32>
    %cst_23 = arith.constant dense<0.000000e+00> : vector<60xf32>
    %30 = vector.multi_reduction <add>, %29, %cst_23 [0] : vector<60x60xf32> to vector<60xf32>
    %31 = vector.shape_cast %30 : vector<60xf32> to vector<1x60xf32>
    %cst_24 = arith.constant 0.00833333377 : f32
    %32 = vector.broadcast %cst_24 : f32 to vector<1x60xf32>
    %33 = arith.mulf %27, %32 : vector<1x60xf32>
    %cst_25 = arith.constant 0.00833333377 : f32
    %34 = vector.broadcast %cst_25 : f32 to vector<1x60xf32>
    %35 = arith.mulf %31, %34 : vector<1x60xf32>
    %36 = arith.mulf %33, %33 : vector<1x60xf32>
    %37 = arith.subf %35, %36 : vector<1x60xf32>
    %cst_26 = arith.constant 0.000000e+00 : f32
    %38 = vector.broadcast %cst_26 : f32 to vector<1x60xf32>
    %39 = arith.maximumf %37, %38 : vector<1x60xf32>
    %cst_27 = arith.constant 9.99999974E-6 : f32
    %40 = vector.broadcast %cst_27 : f32 to vector<1x60xf32>
    %41 = arith.addf %39, %40 : vector<1x60xf32>
    %42 = math.rsqrt %41 : vector<1x60xf32>
    %43 = arith.mulf %42, %10 : vector<1x60xf32>
    %44 = arith.mulf %33, %43 : vector<1x60xf32>
    %45 = arith.subf %11, %44 : vector<1x60xf32>
    %46 = vector.broadcast %45 : vector<1x60xf32> to vector<60x60xf32>
    %47 = arith.addf %46, %9 : vector<60x60xf32>
    %48 = vector.shape_cast %43 : vector<1x60xf32> to vector<1x1x60xf32>
    %49 = vector.broadcast %48 : vector<1x1x60xf32> to vector<2x60x60xf32>
    %50 = arith.mulf %24, %49 : vector<2x60x60xf32>
    %51 = vector.shape_cast %47 : vector<60x60xf32> to vector<1x60x60xf32>
    %52 = vector.broadcast %51 : vector<1x60x60xf32> to vector<2x60x60xf32>
    %53 = arith.addf %50, %52 : vector<2x60x60xf32>
    %cst_28 = arith.constant dense<0xFF800000> : vector<2x60xf32>
    %54 = vector.multi_reduction <maximumf>, %53, %cst_28 [2] : vector<2x60x60xf32> to vector<2x60xf32>
    %55 = vector.shape_cast %54 : vector<2x60xf32> to vector<2x60x1xf32>
    %56 = vector.broadcast %55 : vector<2x60x1xf32> to vector<2x60x60xf32>
    %57 = arith.subf %53, %56 : vector<2x60x60xf32>
    %58 = math.exp %57 : vector<2x60x60xf32>
    %cst_29 = arith.constant dense<0.000000e+00> : vector<2x60xf32>
    %59 = vector.multi_reduction <add>, %58, %cst_29 [2] : vector<2x60x60xf32> to vector<2x60xf32>
    %60 = vector.shape_cast %59 : vector<2x60xf32> to vector<2x60x1xf32>
    %61 = tpu.reciprocal %60 {approx = true} : vector<2x60x1xf32> -> vector<2x60x1xf32>
    %62 = vector.broadcast %61 : vector<2x60x1xf32> to vector<2x60x60xf32>
    %63 = arith.mulf %58, %62 : vector<2x60x60xf32>
    %c0_30 = arith.constant 0 : index
    %c0_31 = arith.constant 0 : index
    %c0_32 = arith.constant 0 : index
    %64 = vector.load %arg8[%c0_30, %c0_31, %c0_32] : memref<2x60x60xf32, #tpu.memory_space<vmem>>, vector<2x60x60xf32>
    tpu.vector_store %arg8[%c0_30, %c0_31, %c0_32], %63 {strides = array<i32>} : memref<2x60x60xf32, #tpu.memory_space<vmem>>, vector<2x60x60xf32>,
    return
  }
}

</mosaic_0001>

<llo_original>
// kernel: tpu_custom_call.1
$region0: #{tpu_custom_call.1}
  #allocation0 [shape = 'u32[]', space=smem, size = 0x4, offset = 0x4, fixed_abs, tag = 'smem constant byte address 0x4 - core index']
  #allocation1 [shape = 'u32[144,128]{1,0:T(1,128)}', space=vmem, size = 0x12000, scoped, tag = 'internal scratch']
  %s0 = inlined_call_operand.vmem [shape: bf16[2,60,64], index: 0, kind: input, shape index: {}]
  %s1 = inlined_call_operand.vmem [shape: bf16[2,64,60], index: 1, kind: input, shape index: {}]
  %s2 = inlined_call_operand.vmem [shape: bf16[64,64], index: 2, kind: input, shape index: {}]
  %s3 = inlined_call_operand.vmem [shape: f32[60,60], index: 3, kind: input, shape index: {}]
  %s4 = inlined_call_operand.hbm [shape: bf16[60,60], index: 4, kind: input, shape index: {}]
  %s5 = inlined_call_operand.vmem [shape: f32[1,60], index: 5, kind: input, shape index: {}]
  %s6 = inlined_call_operand.vmem [shape: f32[1,60], index: 6, kind: input, shape index: {}]
  %s7 = inlined_call_operand.vmem [shape: f32[60,60], index: 7, kind: input, shape index: {}]
  %s8 = inlined_call_operand.vmem [shape: f32[2,60,60], index: 8, kind: output, shape index: {}]
  %s9 = sld [smem:[#allocation0]]
  $region46: #{tpu_custom_call.1} parent=0
    _
  %s11 = ssub.s32 1, %s9
  %s12 = scalar_select 0, %s11, %s9
  $region1: #{tpu_custom_call.1} parent=0
    #allocation2 [shape = 'u8[16384]{0}', space=vmem, size = 0x4000, scoped, tag = 'input window, operand 4, single buffered']
    #allocation3 [shape = 's32[1]{0}', space=sflag, size = 0x4, scoped, tag = 'scoped memory for tpu_custom_call.1']
    %13 = vsyncpa [#allocation3], 0
    // Predicated region
    $region2: #{tpu_custom_call.1} parent=1 // pred_check
      _
    $region3: #{tpu_custom_call.1} parent=1 // pred_check_branch
      %15 = sbr.rel (0) target = $region5
    $region4: #{tpu_custom_call.1} parent=1 // pred_region
      _
    $region5: #{tpu_custom_call.1} parent=1 // pred_fallthru
      _
    // Predicated region
    $region6: #{tpu_custom_call.1} parent=1 // pred_check
      _
    $region7: #{tpu_custom_call.1} parent=1 // pred_check_branch
      %17 = sbr.rel (0) target = $region9
    $region8: #{tpu_custom_call.1} parent=1 // pred_region
      _
    $region9: #{tpu_custom_call.1} parent=1 // pred_fallthru
      _
    // Predicated region
    $region10: #{tpu_custom_call.1} parent=1 // pred_check
      _
    $region11: #{tpu_custom_call.1} parent=1 // pred_check_branch
      %19 = sbr.rel (0) target = $region13
    $region12: #{tpu_custom_call.1} parent=1 // pred_region
      _
    $region13: #{tpu_custom_call.1} parent=1 // pred_fallthru
      _
    // Predicated region
    $region14: #{tpu_custom_call.1} parent=1 // pred_check
      _
    $region15: #{tpu_custom_call.1} parent=1 // pred_check_branch
      %21 = sbr.rel (0) target = $region17
    $region16: #{tpu_custom_call.1} parent=1 // pred_region
      _
    $region17: #{tpu_custom_call.1} parent=1 // pred_fallthru
      _
    // Predicated region
    $region18: #{tpu_custom_call.1} parent=1 // pred_check
      _
    $region19: #{tpu_custom_call.1} parent=1 // pred_check_branch
      %23 = sbr.rel (0) target = $region21
    $region20: #{tpu_custom_call.1} parent=1 // pred_region
      %s25 = ssub.s32 512, 512
      %26 = vsyncadd [#allocation3], %s25
      %s27 = sshll.u32 [#allocation2], 4
      %s28 = int_to_ptr.vmem [resolvable:$true] %s27
      %33 = dma.hbm_to_vmem [thread:$0]  %s4, 512, %s28, [#allocation3], 64, 64, 4
    $region21: #{tpu_custom_call.1} parent=1 // pred_fallthru
      _
    // Predicated region
    $region22: #{tpu_custom_call.1} parent=1 // pred_check
      _
    $region23: #{tpu_custom_call.1} parent=1 // pred_check_branch
      %35 = sbr.rel (0) target = $region25
    $region24: #{tpu_custom_call.1} parent=1 // pred_region
      _
    $region25: #{tpu_custom_call.1} parent=1 // pred_fallthru
      _
    // Predicated region
    $region26: #{tpu_custom_call.1} parent=1 // pred_check
      _
    $region27: #{tpu_custom_call.1} parent=1 // pred_check_branch
      %37 = sbr.rel (0) target = $region29
    $region28: #{tpu_custom_call.1} parent=1 // pred_region
      _
    $region29: #{tpu_custom_call.1} parent=1 // pred_fallthru
      _
    // Predicated region
    $region30: #{tpu_custom_call.1} parent=1 // pred_check
      _
    $region31: #{tpu_custom_call.1} parent=1 // pred_check_branch
      %39 = sbr.rel (0) target = $region33
    $region32: #{tpu_custom_call.1} parent=1 // pred_region
      _
    $region33: #{tpu_custom_call.1} parent=1 // pred_fallthru
      _
    // Predicated region
    $region34: #{tpu_custom_call.1} parent=1 // pred_check
      _
    $region35: #{tpu_custom_call.1} parent=1 // pred_check_branch
      %41 = sbr.rel (0) target = $region37
    $region36: #{tpu_custom_call.1} parent=1 // pred_region
      %42 = dma.done [#allocation3], 512
    $region37: #{tpu_custom_call.1} parent=1 // pred_fallthru
      _
    %v44 = vld [vmem:[%s0] sm:$0xf]
    %v45 = vld [vmem:[%s0 + $0x4] sm:$0xf]
    %v46 = vld [vmem:[%s0 + $0x8] sm:$0xf]
    %v47 = vld [vmem:[%s0 + $0xc] sm:$0xf]
    %v48 = vld [vmem:[%s0 + $0x10] sm:$0xf]
    %v49 = vld [vmem:[%s0 + $0x14] sm:$0xf]
    %v50 = vld [vmem:[%s0 + $0x18] sm:$0xf]
    %v51 = vld [vmem:[%s0 + $0x1c] sm:$0x3]
    %v52 = vld [vmem:[%s0 + $0x20] sm:$0xf]
    %v53 = vld [vmem:[%s0 + $0x24] sm:$0xf]
    %v54 = vld [vmem:[%s0 + $0x28] sm:$0xf]
    %v55 = vld [vmem:[%s0 + $0x2c] sm:$0xf]
    %v56 = vld [vmem:[%s0 + $0x30] sm:$0xf]
    %v57 = vld [vmem:[%s0 + $0x34] sm:$0xf]
    %v58 = vld [vmem:[%s0 + $0x38] sm:$0xf]
    %v59 = vld [vmem:[%s0 + $0x3c] sm:$0x3]
    %v60 = vld [vmem:[%s1] sm:$0xf]
    %v61 = vld [vmem:[%s1 + $0x4] sm:$0xf]
    %v62 = vld [vmem:[%s1 + $0x8] sm:$0xf]
    %v63 = vld [vmem:[%s1 + $0xc] sm:$0xf]
    %v64 = vld [vmem:[%s1 + $0x10] sm:$0xf]
    %v65 = vld [vmem:[%s1 + $0x14] sm:$0xf]
    %v66 = vld [vmem:[%s1 + $0x18] sm:$0xf]
    %v67 = vld [vmem:[%s1 + $0x1c] sm:$0xf]
    %v68 = vld [vmem:[%s1 + $0x20] sm:$0xf]
    %v69 = vld [vmem:[%s1 + $0x24] sm:$0xf]
    %v70 = vld [vmem:[%s1 + $0x28] sm:$0xf]
    %v71 = vld [vmem:[%s1 + $0x2c] sm:$0xf]
    %v72 = vld [vmem:[%s1 + $0x30] sm:$0xf]
    %v73 = vld [vmem:[%s1 + $0x34] sm:$0xf]
    %v74 = vld [vmem:[%s1 + $0x38] sm:$0xf]
    %v75 = vld [vmem:[%s1 + $0x3c] sm:$0xf]
    %v76 = vld [vmem:[%s2] sm:$0xf]
    %v77 = vld [vmem:[%s2 + $0x4] sm:$0xf]
    %v78 = vld [vmem:[%s2 + $0x8] sm:$0xf]
    %v79 = vld [vmem:[%s2 + $0xc] sm:$0xf]
    %v80 = vld [vmem:[%s2 + $0x10] sm:$0xf]
    %v81 = vld [vmem:[%s2 + $0x14] sm:$0xf]
    %v82 = vld [vmem:[%s2 + $0x18] sm:$0xf]
    %v83 = vld [vmem:[%s2 + $0x1c] sm:$0xf]
    %v84 = vld [vmem:[#allocation2] sm:$0xf]
    %v85 = vld [vmem:[#allocation2 + $0x4] sm:$0xf]
    %v86 = vld [vmem:[#allocation2 + $0x8] sm:$0xf]
    %v87 = vld [vmem:[#allocation2 + $0xc] sm:$0xf]
    %v88 = vld [vmem:[#allocation2 + $0x10] sm:$0xf]
    %v89 = vld [vmem:[#allocation2 + $0x14] sm:$0xf]
    %v90 = vld [vmem:[#allocation2 + $0x18] sm:$0xf]
    %v91 = vld [vmem:[#allocation2 + $0x1c] sm:$0x3]
    %v92 = vld [vmem:[%s3] sm:$0xff]
    %v93 = vld [vmem:[%s3 + $0x8] sm:$0xff]
    %v94 = vld [vmem:[%s3 + $0x10] sm:$0xff]
    %v95 = vld [vmem:[%s3 + $0x18] sm:$0xff]
    %v96 = vld [vmem:[%s3 + $0x20] sm:$0xff]
    %v97 = vld [vmem:[%s3 + $0x28] sm:$0xff]
    %v98 = vld [vmem:[%s3 + $0x30] sm:$0xff]
    %v99 = vld [vmem:[%s3 + $0x38] sm:$0xf]
    %v100 = vld [vmem:[%s7] sm:$0xff]
    %v101 = vld [vmem:[%s7 + $0x8] sm:$0xff]
    %v102 = vld [vmem:[%s7 + $0x10] sm:$0xff]
    %v103 = vld [vmem:[%s7 + $0x18] sm:$0xff]
    %v104 = vld [vmem:[%s7 + $0x20] sm:$0xff]
    %v105 = vld [vmem:[%s7 + $0x28] sm:$0xff]
    %v106 = vld [vmem:[%s7 + $0x30] sm:$0xff]
    %v107 = vld [vmem:[%s7 + $0x38] sm:$0xf]
    %v108 = vld [vmem:[%s5] sm:$0x1]
    %v109 = vld [vmem:[%s6] sm:$0x1]
    %v118 = vunpack.c.l.b16 %v44
    %v119 = vunpack.c.l.b16 %v45
    %v120 = vunpack.c.l.b16 %v46
    %v121 = vunpack.c.l.b16 %v47
    %v122 = vunpack.c.l.b16 %v48
    %v123 = vunpack.c.l.b16 %v49
    %v124 = vunpack.c.l.b16 %v50
    %v125 = vunpack.c.l.b16 %v51
    %v126 = vpack.c.b16 %v119, %v118
    %v127 = vpack.c.b16 %v121, %v120
    %v128 = vpack.c.b16 %v123, %v122
    %v129 = vpack.c.b16 %v125, %v124
    %v138 = vunpack.c.l.b16 %v76
    %v139 = vunpack.c.l.b16 %v77
    %v140 = vunpack.c.l.b16 %v78
    %v141 = vunpack.c.l.b16 %v79
    %v142 = vunpack.c.l.b16 %v80
    %v143 = vunpack.c.l.b16 %v81
    %v144 = vunpack.c.l.b16 %v82
    %v145 = vunpack.c.l.b16 %v83
    %v146 = vpack.c.b16 %v139, %v138
    %v147 = vpack.c.b16 %v141, %v140
    %v148 = vpack.c.b16 %v143, %v142
    %v149 = vpack.c.b16 %v145, %v144
    %vm154 = vcmask 523264
    %v156 = vsel %vm154, %v126, 0
    %v159 = vsel %vm154, %v127, 0
    %v162 = vsel %vm154, %v128, 0
    %v165 = vsel %vm154, %v129, 0
    %167 = vmatprep.subr.bf16.mxu0 0
    %168 = vmatpush1.bf16.msra.mxu0 %v146
    %169 = vmatprep.subr.bf16.mxu0 0
    %170 = vmatpush1.bf16.msra.mxu0 %v147
    %171 = vmatprep.subr.bf16.mxu0 0
    %172 = vmatpush1.bf16.msra.mxu0 %v148
    %173 = vmatprep.subr.bf16.mxu0 0
    %174 = vmatpush1.bf16.msra.mxu0 %v149
    %175 = vmatprep.subr.bf16.mxu0 0
    %176 = vmatpush1.bf16.msra.mxu0 0
    %177 = vmatprep.subr.bf16.mxu0 0
    %178 = vmatpush1.bf16.msra.mxu0 0
    %179 = vmatprep.subr.bf16.mxu0 0
    %180 = vmatpush1.bf16.msra.mxu0 0
    %181 = vmatprep.subr.bf16.mxu0 0
    %182 = vmatpush1.bf16.msra.mxu0 0
    %183 = vmatprep.subr.bf16.mxu0 0
    %184 = vmatpush1.bf16.msra.mxu0 0
    %185 = vmatprep.subr.bf16.mxu0 0
    %186 = vmatpush1.bf16.msra.mxu0 0
    %187 = vmatprep.subr.bf16.mxu0 0
    %188 = vmatpush1.bf16.msra.mxu0 0
    %189 = vmatprep.subr.bf16.mxu0 0
    %190 = vmatpush1.bf16.msra.mxu0 0
    %191 = vmatprep.subr.bf16.mxu0 0
    %192 = vmatpush1.bf16.msra.mxu0 0
    %193 = vmatprep.subr.bf16.mxu0 0
    %194 = vmatpush1.bf16.msra.mxu0 0
    %195 = vmatprep.subr.bf16.mxu0 0
    %196 = vmatpush1.bf16.msra.mxu0 0
    %197 = vmatprep.subr.bf16.mxu0 0
    %198 = vmatpush1.bf16.msra.mxu0 0
    %199 = vmatprep.mubr.bf16.mxu0 0
    %200 = vmatmul.mubr.bf16.gmra.mrb[0].mxu0 %v156
    %v201 = vpop.f32.mrb[0].mxu0
    %v202 = vadd.f32 0.0, %v201
    %v203 = vpop.f32.mrb[0].mxu0
    %v204 = vpop.f32.mrb[0].mxu0
    %v205 = vadd.f32 0.0, %v204
    %v206 = vpop.f32.mrb[0].mxu0
    %207 = vmatprep.mubr.bf16.mxu0 0
    %208 = vmatmul.mubr.bf16.gmra.mrb[0].mxu0 %v159
    %v209 = vpop.f32.mrb[0].mxu0
    %v210 = vadd.f32 0.0, %v209
    %v211 = vpop.f32.mrb[0].mxu0
    %v212 = vpop.f32.mrb[0].mxu0
    %v213 = vadd.f32 0.0, %v212
    %v214 = vpop.f32.mrb[0].mxu0
    %215 = vmatprep.mubr.bf16.mxu0 0
    %216 = vmatmul.mubr.bf16.gmra.mrb[0].mxu0 %v162
    %v217 = vpop.f32.mrb[0].mxu0
    %v218 = vadd.f32 0.0, %v217
    %v219 = vpop.f32.mrb[0].mxu0
    %v220 = vpop.f32.mrb[0].mxu0
    %v221 = vadd.f32 0.0, %v220
    %v222 = vpop.f32.mrb[0].mxu0
    %223 = vmatprep.mubr.bf16.mxu0 0
    %224 = vmatmul.mubr.bf16.gmra.mrb[0].mxu0 %v165
    %v225 = vpop.f32.mrb[0].mxu0
    %v226 = vadd.f32 0.0, %v225
    %v227 = vpop.f32.mrb[0].mxu0
    %v228 = vpop.f32.mrb[0].mxu0
    %v229 = vadd.f32 0.0, %v228
    %v230 = vpop.f32.mrb[0].mxu0
    %231 = vdwg.mxu0
    %v240 = vunpack.c.l.b16 %v52
    %v241 = vunpack.c.l.b16 %v53
    %v242 = vunpack.c.l.b16 %v54
    %v243 = vunpack.c.l.b16 %v55
    %v244 = vunpack.c.l.b16 %v56
    %v245 = vunpack.c.l.b16 %v57
    %v246 = vunpack.c.l.b16 %v58
    %v247 = vunpack.c.l.b16 %v59
    %v248 = vpack.c.b16 %v241, %v240
    %v249 = vpack.c.b16 %v243, %v242
    %v250 = vpack.c.b16 %v245, %v244
    %v251 = vpack.c.b16 %v247, %v246
    %v253 = vsel %vm154, %v248, 0
    %v256 = vsel %vm154, %v249, 0
    %v259 = vsel %vm154, %v250, 0
    %v262 = vsel %vm154, %v251, 0
    %264 = vmatprep.subr.bf16.mxu0 0
    %265 = vmatpush1.bf16.msra.mxu0 %v146
    %266 = vmatprep.subr.bf16.mxu0 0
    %267 = vmatpush1.bf16.msra.mxu0 %v147
    %268 = vmatprep.subr.bf16.mxu0 0
    %269 = vmatpush1.bf16.msra.mxu0 %v148
    %270 = vmatprep.subr.bf16.mxu0 0
    %271 = vmatpush1.bf16.msra.mxu0 %v149
    %272 = vmatprep.subr.bf16.mxu0 0
    %273 = vmatpush1.bf16.msra.mxu0 0
    %274 = vmatprep.subr.bf16.mxu0 0
    %275 = vmatpush1.bf16.msra.mxu0 0
    %276 = vmatprep.subr.bf16.mxu0 0
    %277 = vmatpush1.bf16.msra.mxu0 0
    %278 = vmatprep.subr.bf16.mxu0 0
    %279 = vmatpush1.bf16.msra.mxu0 0
    %280 = vmatprep.subr.bf16.mxu0 0
    %281 = vmatpush1.bf16.msra.mxu0 0
    %282 = vmatprep.subr.bf16.mxu0 0
    %283 = vmatpush1.bf16.msra.mxu0 0
    %284 = vmatprep.subr.bf16.mxu0 0
    %285 = vmatpush1.bf16.msra.mxu0 0
    %286 = vmatprep.subr.bf16.mxu0 0
    %287 = vmatpush1.bf16.msra.mxu0 0
    %288 = vmatprep.subr.bf16.mxu0 0
    %289 = vmatpush1.bf16.msra.mxu0 0
    %290 = vmatprep.subr.bf16.mxu0 0
    %291 = vmatpush1.bf16.msra.mxu0 0
    %292 = vmatprep.subr.bf16.mxu0 0
    %293 = vmatpush1.bf16.msra.mxu0 0
    %294 = vmatprep.subr.bf16.mxu0 0
    %295 = vmatpush1.bf16.msra.mxu0 0
    %296 = vmatprep.mubr.bf16.mxu0 0
    %297 = vmatmul.mubr.bf16.gmra.mrb[0].mxu0 %v253
    %v298 = vpop.f32.mrb[0].mxu0
    %v299 = vadd.f32 0.0, %v298
    %v300 = vpop.f32.mrb[0].mxu0
    %v301 = vpop.f32.mrb[0].mxu0
    %v302 = vadd.f32 0.0, %v301
    %v303 = vpop.f32.mrb[0].mxu0
    %304 = vmatprep.mubr.bf16.mxu0 0
    %305 = vmatmul.mubr.bf16.gmra.mrb[0].mxu0 %v256
    %v306 = vpop.f32.mrb[0].mxu0
    %v307 = vadd.f32 0.0, %v306
    %v308 = vpop.f32.mrb[0].mxu0
    %v309 = vpop.f32.mrb[0].mxu0
    %v310 = vadd.f32 0.0, %v309
    %v311 = vpop.f32.mrb[0].mxu0
    %312 = vmatprep.mubr.bf16.mxu0 0
    %313 = vmatmul.mubr.bf16.gmra.mrb[0].mxu0 %v259
    %v314 = vpop.f32.mrb[0].mxu0
    %v315 = vadd.f32 0.0, %v314
    %v316 = vpop.f32.mrb[0].mxu0
    %v317 = vpop.f32.mrb[0].mxu0
    %v318 = vadd.f32 0.0, %v317
    %v319 = vpop.f32.mrb[0].mxu0
    %320 = vmatprep.mubr.bf16.mxu0 0
    %321 = vmatmul.mubr.bf16.gmra.mrb[0].mxu0 %v262
    %v322 = vpop.f32.mrb[0].mxu0
    %v323 = vadd.f32 0.0, %v322
    %v324 = vpop.f32.mrb[0].mxu0
    %v325 = vpop.f32.mrb[0].mxu0
    %v326 = vadd.f32 0.0, %v325
    %v327 = vpop.f32.mrb[0].mxu0
    %328 = vdwg.mxu0
    %v329 = vpack.c.bf16 %v205, %v202
    %v330 = vpack.c.bf16 %v213, %v210
    %v331 = vpack.c.bf16 %v221, %v218
    %v332 = vpack.c.bf16 %v229, %v226
    %v333 = vpack.c.bf16 %v302, %v299
    %v334 = vpack.c.bf16 %v310, %v307
    %v335 = vpack.c.bf16 %v318, %v315
    %v336 = vpack.c.bf16 %v326, %v323
    %v345 = vunpack.c.l.b16 %v60
    %v346 = vunpack.c.l.b16 %v61
    %v347 = vunpack.c.l.b16 %v62
    %v348 = vunpack.c.l.b16 %v63
    %v349 = vunpack.c.l.b16 %v64
    %v350 = vunpack.c.l.b16 %v65
    %v351 = vunpack.c.l.b16 %v66
    %v352 = vunpack.c.l.b16 %v67
    %v353 = vpack.c.b16 %v346, %v345
    %v354 = vpack.c.b16 %v348, %v347
    %v355 = vpack.c.b16 %v350, %v349
    %v356 = vpack.c.b16 %v352, %v351
    %v362 = vsel %vm154, %v329, 0
    %v365 = vsel %vm154, %v330, 0
    %v368 = vsel %vm154, %v331, 0
    %v371 = vsel %vm154, %v332, 0
    %373 = vmatprep.subr.bf16.mxu0 0
    %374 = vmatpush1.bf16.msra.mxu0 %v353
    %375 = vmatprep.subr.bf16.mxu0 0
    %376 = vmatpush1.bf16.msra.mxu0 %v354
    %377 = vmatprep.subr.bf16.mxu0 0
    %378 = vmatpush1.bf16.msra.mxu0 %v355
    %379 = vmatprep.subr.bf16.mxu0 0
    %380 = vmatpush1.bf16.msra.mxu0 %v356
    %381 = vmatprep.subr.bf16.mxu0 0
    %382 = vmatpush1.bf16.msra.mxu0 0
    %383 = vmatprep.subr.bf16.mxu0 0
    %384 = vmatpush1.bf16.msra.mxu0 0
    %385 = vmatprep.subr.bf16.mxu0 0
    %386 = vmatpush1.bf16.msra.mxu0 0
    %387 = vmatprep.subr.bf16.mxu0 0
    %388 = vmatpush1.bf16.msra.mxu0 0
    %389 = vmatprep.subr.bf16.mxu0 0
    %390 = vmatpush1.bf16.msra.mxu0 0
    %391 = vmatprep.subr.bf16.mxu0 0
    %392 = vmatpush1.bf16.msra.mxu0 0
    %393 = vmatprep.subr.bf16.mxu0 0
    %394 = vmatpush1.bf16.msra.mxu0 0
    %395 = vmatprep.subr.bf16.mxu0 0
    %396 = vmatpush1.bf16.msra.mxu0 0
    %397 = vmatprep.subr.bf16.mxu0 0
    %398 = vmatpush1.bf16.msra.mxu0 0
    %399 = vmatprep.subr.bf16.mxu0 0
    %400 = vmatpush1.bf16.msra.mxu0 0
    %401 = vmatprep.subr.bf16.mxu0 0
    %402 = vmatpush1.bf16.msra.mxu0 0
    %403 = vmatprep.subr.bf16.mxu0 0
    %404 = vmatpush1.bf16.msra.mxu0 0
    %405 = vmatprep.mubr.bf16.mxu0 0
    %406 = vmatmul.mubr.bf16.gmra.mrb[0].mxu0 %v362
    %v407 = vpop.f32.mrb[0].mxu0
    %v408 = vadd.f32 %v92, %v407
    %v409 = vpop.f32.mrb[0].mxu0
    %v410 = vpop.f32.mrb[0].mxu0
    %v411 = vadd.f32 %v93, %v410
    %v412 = vpop.f32.mrb[0].mxu0
    %413 = vmatprep.mubr.bf16.mxu0 0
    %414 = vmatmul.mubr.bf16.gmra.mrb[0].mxu0 %v365
    %v415 = vpop.f32.mrb[0].mxu0
    %v416 = vadd.f32 %v94, %v415
    %v417 = vpop.f32.mrb[0].mxu0
    %v418 = vpop.f32.mrb[0].mxu0
    %v419 = vadd.f32 %v95, %v418
    %v420 = vpop.f32.mrb[0].mxu0
    %421 = vmatprep.mubr.bf16.mxu0 0
    %422 = vmatmul.mubr.bf16.gmra.mrb[0].mxu0 %v368
    %v423 = vpop.f32.mrb[0].mxu0
    %v424 = vadd.f32 %v96, %v423
    %v425 = vpop.f32.mrb[0].mxu0
    %v426 = vpop.f32.mrb[0].mxu0
    %v427 = vadd.f32 %v97, %v426
    %v428 = vpop.f32.mrb[0].mxu0
    %429 = vmatprep.mubr.bf16.mxu0 0
    %430 = vmatmul.mubr.bf16.gmra.mrb[0].mxu0 %v371
    %v431 = vpop.f32.mrb[0].mxu0
    %v432 = vadd.f32 %v98, %v431
    %v433 = vpop.f32.mrb[0].mxu0
    %v434 = vpop.f32.mrb[0].mxu0
    %v435 = vadd.f32 %v99, %v434
    %v436 = vpop.f32.mrb[0].mxu0
    %437 = vdwg.mxu0
    %v446 = vunpack.c.l.b16 %v68
    %v447 = vunpack.c.l.b16 %v69
    %v448 = vunpack.c.l.b16 %v70
    %v449 = vunpack.c.l.b16 %v71
    %v450 = vunpack.c.l.b16 %v72
    %v451 = vunpack.c.l.b16 %v73
    %v452 = vunpack.c.l.b16 %v74
    %v453 = vunpack.c.l.b16 %v75
    %v454 = vpack.c.b16 %v447, %v446
    %v455 = vpack.c.b16 %v449, %v448
    %v456 = vpack.c.b16 %v451, %v450
    %v457 = vpack.c.b16 %v453, %v452
    %v463 = vsel %vm154, %v333, 0
    %v466 = vsel %vm154, %v334, 0
    %v469 = vsel %vm154, %v335, 0
    %v472 = vsel %vm154, %v336, 0
    %474 = vmatprep.subr.bf16.mxu0 0
    %475 = vmatpush1.bf16.msra.mxu0 %v454
    %476 = vmatprep.subr.bf16.mxu0 0
    %477 = vmatpush1.bf16.msra.mxu0 %v455
    %478 = vmatprep.subr.bf16.mxu0 0
    %479 = vmatpush1.bf16.msra.mxu0 %v456
    %480 = vmatprep.subr.bf16.mxu0 0
    %481 = vmatpush1.bf16.msra.mxu0 %v457
    %482 = vmatprep.subr.bf16.mxu0 0
    %483 = vmatpush1.bf16.msra.mxu0 0
    %484 = vmatprep.subr.bf16.mxu0 0
    %485 = vmatpush1.bf16.msra.mxu0 0
    %486 = vmatprep.subr.bf16.mxu0 0
    %487 = vmatpush1.bf16.msra.mxu0 0
    %488 = vmatprep.subr.bf16.mxu0 0
    %489 = vmatpush1.bf16.msra.mxu0 0
    %490 = vmatprep.subr.bf16.mxu0 0
    %491 = vmatpush1.bf16.msra.mxu0 0
    %492 = vmatprep.subr.bf16.mxu0 0
    %493 = vmatpush1.bf16.msra.mxu0 0
    %494 = vmatprep.subr.bf16.mxu0 0
    %495 = vmatpush1.bf16.msra.mxu0 0
    %496 = vmatprep.subr.bf16.mxu0 0
    %497 = vmatpush1.bf16.msra.mxu0 0
    %498 = vmatprep.subr.bf16.mxu0 0
    %499 = vmatpush1.bf16.msra.mxu0 0
    %500 = vmatprep.subr.bf16.mxu0 0
    %501 = vmatpush1.bf16.msra.mxu0 0
    %502 = vmatprep.subr.bf16.mxu0 0
    %503 = vmatpush1.bf16.msra.mxu0 0
    %504 = vmatprep.subr.bf16.mxu0 0
    %505 = vmatpush1.bf16.msra.mxu0 0
    %506 = vmatprep.mubr.bf16.mxu0 0
    %507 = vmatmul.mubr.bf16.gmra.mrb[0].mxu0 %v463
    %v508 = vpop.f32.mrb[0].mxu0
    %v509 = vadd.f32 %v92, %v508
    %v510 = vpop.f32.mrb[0].mxu0
    %v511 = vpop.f32.mrb[0].mxu0
    %v512 = vadd.f32 %v93, %v511
    %v513 = vpop.f32.mrb[0].mxu0
    %514 = vmatprep.mubr.bf16.mxu0 0
    %515 = vmatmul.mubr.bf16.gmra.mrb[0].mxu0 %v466
    %v516 = vpop.f32.mrb[0].mxu0
    %v517 = vadd.f32 %v94, %v516
    %v518 = vpop.f32.mrb[0].mxu0
    %v519 = vpop.f32.mrb[0].mxu0
    %v520 = vadd.f32 %v95, %v519
    %v521 = vpop.f32.mrb[0].mxu0
    %522 = vmatprep.mubr.bf16.mxu0 0
    %523 = vmatmul.mubr.bf16.gmra.mrb[0].mxu0 %v469
    %v524 = vpop.f32.mrb[0].mxu0
    %v525 = vadd.f32 %v96, %v524
    %v526 = vpop.f32.mrb[0].mxu0
    %v527 = vpop.f32.mrb[0].mxu0
    %v528 = vadd.f32 %v97, %v527
    %v529 = vpop.f32.mrb[0].mxu0
    %530 = vmatprep.mubr.bf16.mxu0 0
    %531 = vmatmul.mubr.bf16.gmra.mrb[0].mxu0 %v472
    %v532 = vpop.f32.mrb[0].mxu0
    %v533 = vadd.f32 %v98, %v532
    %v534 = vpop.f32.mrb[0].mxu0
    %v535 = vpop.f32.mrb[0].mxu0
    %v536 = vadd.f32 %v99, %v535
    %v537 = vpop.f32.mrb[0].mxu0
    %538 = vdwg.mxu0
    %v539 = vxor.u32 %v408, 2147483648
    %v540 = vxor.u32 %v411, 2147483648
    %v541 = vxor.u32 %v416, 2147483648
    %v542 = vxor.u32 %v419, 2147483648
    %v543 = vxor.u32 %v424, 2147483648
    %v544 = vxor.u32 %v427, 2147483648
    %v545 = vxor.u32 %v432, 2147483648
    %v546 = vxor.u32 %v435, 2147483648
    %v547 = vxor.u32 %v509, 2147483648
    %v548 = vxor.u32 %v512, 2147483648
    %v549 = vxor.u32 %v517, 2147483648
    %v550 = vxor.u32 %v520, 2147483648
    %v551 = vxor.u32 %v525, 2147483648
    %v552 = vxor.u32 %v528, 2147483648
    %v553 = vxor.u32 %v533, 2147483648
    %v554 = vxor.u32 %v536, 2147483648
    %v555 = vmul.f32 %v539, 1.442695
    %v556 = vpow.pop %v555
    %v557 = vmul.f32 %v540, 1.442695
    %v558 = vpow.pop %v557
    %v559 = vmul.f32 %v541, 1.442695
    %v560 = vpow.pop %v559
    %v561 = vmul.f32 %v542, 1.442695
    %v562 = vpow.pop %v561
    %v563 = vmul.f32 %v543, 1.442695
    %v564 = vpow.pop %v563
    %v565 = vmul.f32 %v544, 1.442695
    %v566 = vpow.pop %v565
    %v567 = vmul.f32 %v545, 1.442695
    %v568 = vpow.pop %v567
    %v569 = vmul.f32 %v546, 1.442695
    %v570 = vpow.pop %v569
    %v571 = vmul.f32 %v547, 1.442695
    %v572 = vpow.pop %v571
    %v573 = vmul.f32 %v548, 1.442695
    %v574 = vpow.pop %v573
    %v575 = vmul.f32 %v549, 1.442695
    %v576 = vpow.pop %v575
    %v577 = vmul.f32 %v550, 1.442695
    %v578 = vpow.pop %v577
    %v579 = vmul.f32 %v551, 1.442695
    %v580 = vpow.pop %v579
    %v581 = vmul.f32 %v552, 1.442695
    %v582 = vpow.pop %v581
    %v583 = vmul.f32 %v553, 1.442695
    %v584 = vpow.pop %v583
    %v585 = vmul.f32 %v554, 1.442695
    %v586 = vpow.pop %v585
    %v587 = vadd.f32 %v556, 1.0
    %v588 = vadd.f32 %v558, 1.0
    %v589 = vadd.f32 %v560, 1.0
    %v590 = vadd.f32 %v562, 1.0
    %v591 = vadd.f32 %v564, 1.0
    %v592 = vadd.f32 %v566, 1.0
    %v593 = vadd.f32 %v568, 1.0
    %v594 = vadd.f32 %v570, 1.0
    %v595 = vadd.f32 %v572, 1.0
    %v596 = vadd.f32 %v574, 1.0
    %v597 = vadd.f32 %v576, 1.0
    %v598 = vadd.f32 %v578, 1.0
    %v599 = vadd.f32 %v580, 1.0
    %v600 = vadd.f32 %v582, 1.0
    %v601 = vadd.f32 %v584, 1.0
    %v602 = vadd.f32 %v586, 1.0
    %v603 = vrcp.pop %v587
    %v604 = vmul.f32 1.0, %v603
    %v605 = vrcp.pop %v588
    %v606 = vmul.f32 1.0, %v605
    %v607 = vrcp.pop %v589
    %v608 = vmul.f32 1.0, %v607
    %v609 = vrcp.pop %v590
    %v610 = vmul.f32 1.0, %v609
    %v611 = vrcp.pop %v591
    %v612 = vmul.f32 1.0, %v611
    %v613 = vrcp.pop %v592
    %v614 = vmul.f32 1.0, %v613
    %v615 = vrcp.pop %v593
    %v616 = vmul.f32 1.0, %v615
    %v617 = vrcp.pop %v594
    %v618 = vmul.f32 1.0, %v617
    %v619 = vrcp.pop %v595
    %v620 = vmul.f32 1.0, %v619
    %v621 = vrcp.pop %v596
    %v622 = vmul.f32 1.0, %v621
    %v623 = vrcp.pop %v597
    %v624 = vmul.f32 1.0, %v623
    %v625 = vrcp.pop %v598
    %v626 = vmul.f32 1.0, %v625
    %v627 = vrcp.pop %v599
    %v628 = vmul.f32 1.0, %v627
    %v629 = vrcp.pop %v600
    %v630 = vmul.f32 1.0, %v629
    %v631 = vrcp.pop %v601
    %v632 = vmul.f32 1.0, %v631
    %v633 = vrcp.pop %v602
    %v634 = vmul.f32 1.0, %v633
    %v635 = vpack.c.bf16 %v606, %v604
    %v636 = vpack.c.bf16 %v610, %v608
    %v637 = vpack.c.bf16 %v614, %v612
    %v638 = vpack.c.bf16 %v618, %v616
    %v639 = vpack.c.bf16 %v622, %v620
    %v640 = vpack.c.bf16 %v626, %v624
    %v641 = vpack.c.bf16 %v630, %v628
    %v642 = vpack.c.bf16 %v634, %v632
    %v651 = vunpack.c.l.b16 %v84
    %v652 = vunpack.c.l.b16 %v85
    %v653 = vunpack.c.l.b16 %v86
    %v654 = vunpack.c.l.b16 %v87
    %v655 = vunpack.c.l.b16 %v88
    %v656 = vunpack.c.l.b16 %v89
    %v657 = vunpack.c.l.b16 %v90
    %v658 = vunpack.c.l.b16 %v91
    %v659 = vpack.c.b16 %v652, %v651
    %v660 = vpack.c.b16 %v654, %v653
    %v661 = vpack.c.b16 %v656, %v655
    %v662 = vpack.c.b16 %v658, %v657
    %vm663 = vcmask 490496
    %v665 = vsel %vm663, %v659, 0
    %v668 = vsel %vm663, %v660, 0
    %v671 = vsel %vm663, %v661, 0
    %v674 = vsel %vm663, %v662, 0
    %vm676 = vcmask 1045504
    %v678 = vsel %vm676, %v638, 0
    %680 = vmatprep.subr.bf16.mxu0 0
    %681 = vmatpush1.bf16.msra.mxu0 %v635
    %682 = vmatprep.subr.bf16.mxu0 0
    %683 = vmatpush1.bf16.msra.mxu0 %v636
    %684 = vmatprep.subr.bf16.mxu0 0
    %685 = vmatpush1.bf16.msra.mxu0 %v637
    %686 = vmatprep.subr.bf16.mxu0 0
    %687 = vmatpush1.bf16.msra.mxu0 %v678
    %688 = vmatprep.subr.bf16.mxu0 0
    %689 = vmatpush1.bf16.msra.mxu0 0
    %690 = vmatprep.subr.bf16.mxu0 0
    %691 = vmatpush1.bf16.msra.mxu0 0
    %692 = vmatprep.subr.bf16.mxu0 0
    %693 = vmatpush1.bf16.msra.mxu0 0
    %694 = vmatprep.subr.bf16.mxu0 0
    %695 = vmatpush1.bf16.msra.mxu0 0
    %696 = vmatprep.subr.bf16.mxu0 0
    %697 = vmatpush1.bf16.msra.mxu0 0
    %698 = vmatprep.subr.bf16.mxu0 0
    %699 = vmatpush1.bf16.msra.mxu0 0
    %700 = vmatprep.subr.bf16.mxu0 0
    %701 = vmatpush1.bf16.msra.mxu0 0
    %702 = vmatprep.subr.bf16.mxu0 0
    %703 = vmatpush1.bf16.msra.mxu0 0
    %704 = vmatprep.subr.bf16.mxu0 0
    %705 = vmatpush1.bf16.msra.mxu0 0
    %706 = vmatprep.subr.bf16.mxu0 0
    %707 = vmatpush1.bf16.msra.mxu0 0
    %708 = vmatprep.subr.bf16.mxu0 0
    %709 = vmatpush1.bf16.msra.mxu0 0
    %710 = vmatprep.subr.bf16.mxu0 0
    %711 = vmatpush1.bf16.msra.mxu0 0
    %712 = vmatprep.mubr.bf16.mxu0 0
    %713 = vmatmul.mubr.bf16.gmra.mrb[0].mxu0 %v665
    %v714 = vpop.f32.mrb[0].mxu0
    %v715 = vadd.f32 0.0, %v714
    %v716 = vpop.f32.mrb[0].mxu0
    %v717 = vpop.f32.mrb[0].mxu0
    %v718 = vadd.f32 0.0, %v717
    %v719 = vpop.f32.mrb[0].mxu0
    %720 = vmatprep.mubr.bf16.mxu0 0
    %721 = vmatmul.mubr.bf16.gmra.mrb[0].mxu0 %v668
    %v722 = vpop.f32.mrb[0].mxu0
    %v723 = vadd.f32 0.0, %v722
    %v724 = vpop.f32.mrb[0].mxu0
    %v725 = vpop.f32.mrb[0].mxu0
    %v726 = vadd.f32 0.0, %v725
    %v727 = vpop.f32.mrb[0].mxu0
    %728 = vmatprep.mubr.bf16.mxu0 0
    %729 = vmatmul.mubr.bf16.gmra.mrb[0].mxu0 %v671
    %v730 = vpop.f32.mrb[0].mxu0
    %v731 = vadd.f32 0.0, %v730
    %v732 = vpop.f32.mrb[0].mxu0
    %v733 = vpop.f32.mrb[0].mxu0
    %v734 = vadd.f32 0.0, %v733
    %v735 = vpop.f32.mrb[0].mxu0
    %736 = vmatprep.mubr.bf16.mxu0 0
    %737 = vmatmul.mubr.bf16.gmra.mrb[0].mxu0 %v674
    %v738 = vpop.f32.mrb[0].mxu0
    %v739 = vadd.f32 0.0, %v738
    %v740 = vpop.f32.mrb[0].mxu0
    %v741 = vpop.f32.mrb[0].mxu0
    %v742 = vadd.f32 0.0, %v741
    %v743 = vpop.f32.mrb[0].mxu0
    %744 = vdwg.mxu0
    %v746 = vsel %vm676, %v642, 0
    %748 = vmatprep.subr.bf16.mxu0 0
    %749 = vmatpush1.bf16.msra.mxu0 %v639
    %750 = vmatprep.subr.bf16.mxu0 0
    %751 = vmatpush1.bf16.msra.mxu0 %v640
    %752 = vmatprep.subr.bf16.mxu0 0
    %753 = vmatpush1.bf16.msra.mxu0 %v641
    %754 = vmatprep.subr.bf16.mxu0 0
    %755 = vmatpush1.bf16.msra.mxu0 %v746
    %756 = vmatprep.subr.bf16.mxu0 0
    %757 = vmatpush1.bf16.msra.mxu0 0
    %758 = vmatprep.subr.bf16.mxu0 0
    %759 = vmatpush1.bf16.msra.mxu0 0
    %760 = vmatprep.subr.bf16.mxu0 0
    %761 = vmatpush1.bf16.msra.mxu0 0
    %762 = vmatprep.subr.bf16.mxu0 0
    %763 = vmatpush1.bf16.msra.mxu0 0
    %764 = vmatprep.subr.bf16.mxu0 0
    %765 = vmatpush1.bf16.msra.mxu0 0
    %766 = vmatprep.subr.bf16.mxu0 0
    %767 = vmatpush1.bf16.msra.mxu0 0
    %768 = vmatprep.subr.bf16.mxu0 0
    %769 = vmatpush1.bf16.msra.mxu0 0
    %770 = vmatprep.subr.bf16.mxu0 0
    %771 = vmatpush1.bf16.msra.mxu0 0
    %772 = vmatprep.subr.bf16.mxu0 0
    %773 = vmatpush1.bf16.msra.mxu0 0
    %774 = vmatprep.subr.bf16.mxu0 0
    %775 = vmatpush1.bf16.msra.mxu0 0
    %776 = vmatprep.subr.bf16.mxu0 0
    %777 = vmatpush1.bf16.msra.mxu0 0
    %778 = vmatprep.subr.bf16.mxu0 0
    %779 = vmatpush1.bf16.msra.mxu0 0
    %780 = vmatprep.mubr.bf16.mxu0 0
    %781 = vmatmul.mubr.bf16.gmra.mrb[0].mxu0 %v665
    %v782 = vpop.f32.mrb[0].mxu0
    %v783 = vadd.f32 0.0, %v782
    %v784 = vpop.f32.mrb[0].mxu0
    %v785 = vpop.f32.mrb[0].mxu0
    %v786 = vadd.f32 0.0, %v785
    %v787 = vpop.f32.mrb[0].mxu0
    %788 = vmatprep.mubr.bf16.mxu0 0
    %789 = vmatmul.mubr.bf16.gmra.mrb[0].mxu0 %v668
    %v790 = vpop.f32.mrb[0].mxu0
    %v791 = vadd.f32 0.0, %v790
    %v792 = vpop.f32.mrb[0].mxu0
    %v793 = vpop.f32.mrb[0].mxu0
    %v794 = vadd.f32 0.0, %v793
    %v795 = vpop.f32.mrb[0].mxu0
    %796 = vmatprep.mubr.bf16.mxu0 0
    %797 = vmatmul.mubr.bf16.gmra.mrb[0].mxu0 %v671
    %v798 = vpop.f32.mrb[0].mxu0
    %v799 = vadd.f32 0.0, %v798
    %v800 = vpop.f32.mrb[0].mxu0
    %v801 = vpop.f32.mrb[0].mxu0
    %v802 = vadd.f32 0.0, %v801
    %v803 = vpop.f32.mrb[0].mxu0
    %804 = vmatprep.mubr.bf16.mxu0 0
    %805 = vmatmul.mubr.bf16.gmra.mrb[0].mxu0 %v674
    %v806 = vpop.f32.mrb[0].mxu0
    %v807 = vadd.f32 0.0, %v806
    %v808 = vpop.f32.mrb[0].mxu0
    %v809 = vpop.f32.mrb[0].mxu0
    %v810 = vadd.f32 0.0, %v809
    %v811 = vpop.f32.mrb[0].mxu0
    %812 = vdwg.mxu0
    %v813 = vsel %vm663, %v715, 0.0
    %v814 = vsel %vm663, %v783, 0.0
    %v815 = vadd.f32 %v813, %v814
    %v816 = vsel %vm663, %v718, 0.0
    %v817 = vsel %vm663, %v786, 0.0
    %v818 = vadd.f32 %v816, %v817
    %v819 = vsel %vm663, %v723, 0.0
    %v820 = vsel %vm663, %v791, 0.0
    %v821 = vadd.f32 %v819, %v820
    %v822 = vsel %vm663, %v726, 0.0
    %v823 = vsel %vm663, %v794, 0.0
    %v824 = vadd.f32 %v822, %v823
    %v825 = vsel %vm663, %v731, 0.0
    %v826 = vsel %vm663, %v799, 0.0
    %v827 = vadd.f32 %v825, %v826
    %v828 = vsel %vm663, %v734, 0.0
    %v829 = vsel %vm663, %v802, 0.0
    %v830 = vadd.f32 %v828, %v829
    %v831 = vsel %vm663, %v739, 0.0
    %v832 = vsel %vm663, %v807, 0.0
    %v833 = vadd.f32 %v831, %v832
    %vm834 = vcmask 486400
    %v835 = vsel %vm834, %v742, 0.0
    %v836 = vsel %vm834, %v810, 0.0
    %v837 = vadd.f32 %v835, %v836
    %v838 = vsel %vm663, %v815, 0.0
    %v839 = vsel %vm663, %v818, 0.0
    %v840 = vadd.f32 %v838, %v839
    %v841 = vsel %vm663, %v821, 0.0
    %v842 = vadd.f32 %v840, %v841
    %v843 = vsel %vm663, %v824, 0.0
    %v844 = vadd.f32 %v842, %v843
    %v845 = vsel %vm663, %v827, 0.0
    %v846 = vadd.f32 %v844, %v845
    %v847 = vsel %vm663, %v830, 0.0
    %v848 = vadd.f32 %v846, %v847
    %v849 = vsel %vm663, %v833, 0.0
    %v850 = vadd.f32 %v848, %v849
    %v851 = vsel %vm834, %v837, 0.0
    %v852 = vadd.f32 %v850, %v851
    %v853 = vrot.slane %v852, 4
    %v854 = vadd.f32 %v852, %v853
    %v855 = vrot.slane %v854, 2
    %v856 = vadd.f32 %v854, %v855
    %v857 = vrot.slane %v856, 1
    %v858 = vadd.f32 %v856, %v857
    %v859 = vmul.f32 %v715, %v715
    %v860 = vmul.f32 %v718, %v718
    %v861 = vmul.f32 %v723, %v723
    %v862 = vmul.f32 %v726, %v726
    %v863 = vmul.f32 %v731, %v731
    %v864 = vmul.f32 %v734, %v734
    %v865 = vmul.f32 %v739, %v739
    %v866 = vmul.f32 %v742, %v742
    %v867 = vmul.f32 %v783, %v783
    %v868 = vmul.f32 %v786, %v786
    %v869 = vmul.f32 %v791, %v791
    %v870 = vmul.f32 %v794, %v794
    %v871 = vmul.f32 %v799, %v799
    %v872 = vmul.f32 %v802, %v802
    %v873 = vmul.f32 %v807, %v807
    %v874 = vmul.f32 %v810, %v810
    %v875 = vsel %vm663, %v859, 0.0
    %v876 = vsel %vm663, %v867, 0.0
    %v877 = vadd.f32 %v875, %v876
    %v878 = vsel %vm663, %v860, 0.0
    %v879 = vsel %vm663, %v868, 0.0
    %v880 = vadd.f32 %v878, %v879
    %v881 = vsel %vm663, %v861, 0.0
    %v882 = vsel %vm663, %v869, 0.0
    %v883 = vadd.f32 %v881, %v882
    %v884 = vsel %vm663, %v862, 0.0
    %v885 = vsel %vm663, %v870, 0.0
    %v886 = vadd.f32 %v884, %v885
    %v887 = vsel %vm663, %v863, 0.0
    %v888 = vsel %vm663, %v871, 0.0
    %v889 = vadd.f32 %v887, %v888
    %v890 = vsel %vm663, %v864, 0.0
    %v891 = vsel %vm663, %v872, 0.0
    %v892 = vadd.f32 %v890, %v891
    %v893 = vsel %vm663, %v865, 0.0
    %v894 = vsel %vm663, %v873, 0.0
    %v895 = vadd.f32 %v893, %v894
    %v896 = vsel %vm834, %v866, 0.0
    %v897 = vsel %vm834, %v874, 0.0
    %v898 = vadd.f32 %v896, %v897
    %v899 = vsel %vm663, %v877, 0.0
    %v900 = vsel %vm663, %v880, 0.0
    %v901 = vadd.f32 %v899, %v900
    %v902 = vsel %vm663, %v883, 0.0
    %v903 = vadd.f32 %v901, %v902
    %v904 = vsel %vm663, %v886, 0.0
    %v905 = vadd.f32 %v903, %v904
    %v906 = vsel %vm663, %v889, 0.0
    %v907 = vadd.f32 %v905, %v906
    %v908 = vsel %vm663, %v892, 0.0
    %v909 = vadd.f32 %v907, %v908
    %v910 = vsel %vm663, %v895, 0.0
    %v911 = vadd.f32 %v909, %v910
    %v912 = vsel %vm834, %v898, 0.0
    %v913 = vadd.f32 %v911, %v912
    %v914 = vrot.slane %v913, 4
    %v915 = vadd.f32 %v913, %v914
    %v916 = vrot.slane %v915, 2
    %v917 = vadd.f32 %v915, %v916
    %v918 = vrot.slane %v917, 1
    %v919 = vadd.f32 %v917, %v918
    %v920 = vmul.f32 %v858, 0.008333334
    %v921 = vmul.f32 %v919, 0.008333334
    %v922 = vmul.f32 %v920, %v920
    %v923 = vsub.f32 %v921, %v922
    %v924 = vmax.f32 %v923, 0.0
    %v925 = vadd.f32 %v924, 1e-05
    %v926 = vrsqrt.pop %v925
    %v927 = vmul.f32 %v926, %v108
    %v928 = vmul.f32 %v920, %v927
    %v929 = vsub.f32 %v109, %v928
    %v931 = vlaneseq
    %v932 = vshrl.u32 %v931, 7
    %v933 = vsub.s32 0, %v932
    %v934 = vrot.slane %v929, %v933
    %v936 = vadd.f32 %v934, %v100
    %v937 = vadd.f32 %v934, %v101
    %v938 = vadd.f32 %v934, %v102
    %v939 = vadd.f32 %v934, %v103
    %v940 = vadd.f32 %v934, %v104
    %v941 = vadd.f32 %v934, %v105
    %v942 = vadd.f32 %v934, %v106
    %v943 = vadd.f32 %v934, %v107
    %v944 = vlaneseq
    %v945 = vshrl.u32 %v944, 7
    %v946 = vsub.s32 0, %v945
    %v947 = vrot.slane %v927, %v946
    %v948 = vmul.f32 %v715, %v947
    %v949 = vmul.f32 %v718, %v947
    %v950 = vmul.f32 %v723, %v947
    %v951 = vmul.f32 %v726, %v947
    %v952 = vmul.f32 %v731, %v947
    %v953 = vmul.f32 %v734, %v947
    %v954 = vmul.f32 %v739, %v947
    %v955 = vmul.f32 %v742, %v947
    %v956 = vmul.f32 %v783, %v947
    %v957 = vmul.f32 %v786, %v947
    %v958 = vmul.f32 %v791, %v947
    %v959 = vmul.f32 %v794, %v947
    %v960 = vmul.f32 %v799, %v947
    %v961 = vmul.f32 %v802, %v947
    %v962 = vmul.f32 %v807, %v947
    %v963 = vmul.f32 %v810, %v947
    %v964 = vadd.f32 %v948, %v936
    %v965 = vadd.f32 %v949, %v937
    %v966 = vadd.f32 %v950, %v938
    %v967 = vadd.f32 %v951, %v939
    %v968 = vadd.f32 %v952, %v940
    %v969 = vadd.f32 %v953, %v941
    %v970 = vadd.f32 %v954, %v942
    %v971 = vadd.f32 %v955, %v943
    %v972 = vadd.f32 %v956, %v936
    %v973 = vadd.f32 %v957, %v937
    %v974 = vadd.f32 %v958, %v938
    %v975 = vadd.f32 %v959, %v939
    %v976 = vadd.f32 %v960, %v940
    %v977 = vadd.f32 %v961, %v941
    %v978 = vadd.f32 %v962, %v942
    %v979 = vadd.f32 %v963, %v943
    %v980 = vsel %vm663, %v964, -inf
    %981 = vmax.xlane.f32.xlu0 %v980
    %v982 = vpop.xlane.xlu0 %981
    %v983 = vsel %vm663, %v965, -inf
    %984 = vmax.xlane.f32.xlu0 %v983
    %v985 = vpop.xlane.xlu0 %984
    %v986 = vsel %vm663, %v966, -inf
    %987 = vmax.xlane.f32.xlu0 %v986
    %v988 = vpop.xlane.xlu0 %987
    %v989 = vsel %vm663, %v967, -inf
    %990 = vmax.xlane.f32.xlu0 %v989
    %v991 = vpop.xlane.xlu0 %990
    %v992 = vsel %vm663, %v968, -inf
    %993 = vmax.xlane.f32.xlu0 %v992
    %v994 = vpop.xlane.xlu0 %993
    %v995 = vsel %vm663, %v969, -inf
    %996 = vmax.xlane.f32.xlu0 %v995
    %v997 = vpop.xlane.xlu0 %996
    %v998 = vsel %vm663, %v970, -inf
    %999 = vmax.xlane.f32.xlu0 %v998
    %v1000 = vpop.xlane.xlu0 %999
    %v1001 = vsel %vm834, %v971, -inf
    %1002 = vmax.xlane.f32.xlu0 %v1001
    %v1003 = vpop.xlane.xlu0 %1002
    %v1004 = vsel %vm663, %v972, -inf
    %1005 = vmax.xlane.f32.xlu0 %v1004
    %v1006 = vpop.xlane.xlu0 %1005
    %v1007 = vsel %vm663, %v973, -inf
    %1008 = vmax.xlane.f32.xlu0 %v1007
    %v1009 = vpop.xlane.xlu0 %1008
    %v1010 = vsel %vm663, %v974, -inf
    %1011 = vmax.xlane.f32.xlu0 %v1010
    %v1012 = vpop.xlane.xlu0 %1011
    %v1013 = vsel %vm663, %v975, -inf
    %1014 = vmax.xlane.f32.xlu0 %v1013
    %v1015 = vpop.xlane.xlu0 %1014
    %v1016 = vsel %vm663, %v976, -inf
    %1017 = vmax.xlane.f32.xlu0 %v1016
    %v1018 = vpop.xlane.xlu0 %1017
    %v1019 = vsel %vm663, %v977, -inf
    %1020 = vmax.xlane.f32.xlu0 %v1019
    %v1021 = vpop.xlane.xlu0 %1020
    %v1022 = vsel %vm663, %v978, -inf
    %1023 = vmax.xlane.f32.xlu0 %v1022
    %v1024 = vpop.xlane.xlu0 %1023
    %v1025 = vsel %vm834, %v979, -inf
    %1026 = vmax.xlane.f32.xlu0 %v1025
    %v1027 = vpop.xlane.xlu0 %1026
    %v1028 = vsub.f32 %v964, %v982
    %v1029 = vsub.f32 %v965, %v985
    %v1030 = vsub.f32 %v966, %v988
    %v1031 = vsub.f32 %v967, %v991
    %v1032 = vsub.f32 %v968, %v994
    %v1033 = vsub.f32 %v969, %v997
    %v1034 = vsub.f32 %v970, %v1000
    %v1035 = vsub.f32 %v971, %v1003
    %v1036 = vsub.f32 %v972, %v1006
    %v1037 = vsub.f32 %v973, %v1009
    %v1038 = vsub.f32 %v974, %v1012
    %v1039 = vsub.f32 %v975, %v1015
    %v1040 = vsub.f32 %v976, %v1018
    %v1041 = vsub.f32 %v977, %v1021
    %v1042 = vsub.f32 %v978, %v1024
    %v1043 = vsub.f32 %v979, %v1027
    %v1044 = vmul.f32 %v1028, 1.442695
    %v1045 = vpow.pop %v1044
    %v1046 = vmul.f32 %v1029, 1.442695
    %v1047 = vpow.pop %v1046
    %v1048 = vmul.f32 %v1030, 1.442695
    %v1049 = vpow.pop %v1048
    %v1050 = vmul.f32 %v1031, 1.442695
    %v1051 = vpow.pop %v1050
    %v1052 = vmul.f32 %v1032, 1.442695
    %v1053 = vpow.pop %v1052
    %v1054 = vmul.f32 %v1033, 1.442695
    %v1055 = vpow.pop %v1054
    %v1056 = vmul.f32 %v1034, 1.442695
    %v1057 = vpow.pop %v1056
    %v1058 = vmul.f32 %v1035, 1.442695
    %v1059 = vpow.pop %v1058
    %v1060 = vmul.f32 %v1036, 1.442695
    %v1061 = vpow.pop %v1060
    %v1062 = vmul.f32 %v1037, 1.442695
    %v1063 = vpow.pop %v1062
    %v1064 = vmul.f32 %v1038, 1.442695
    %v1065 = vpow.pop %v1064
    %v1066 = vmul.f32 %v1039, 1.442695
    %v1067 = vpow.pop %v1066
    %v1068 = vmul.f32 %v1040, 1.442695
    %v1069 = vpow.pop %v1068
    %v1070 = vmul.f32 %v1041, 1.442695
    %v1071 = vpow.pop %v1070
    %v1072 = vmul.f32 %v1042, 1.442695
    %v1073 = vpow.pop %v1072
    %v1074 = vmul.f32 %v1043, 1.442695
    %v1075 = vpow.pop %v1074
    %v1076 = vsel %vm663, %v1045, 0.0
    %1077 = vadd.xlane.f32.xlu0 %v1076
    %v1078 = vpop.xlane.xlu0 %1077
    %v1079 = vsel %vm663, %v1047, 0.0
    %1080 = vadd.xlane.f32.xlu0 %v1079
    %v1081 = vpop.xlane.xlu0 %1080
    %v1082 = vsel %vm663, %v1049, 0.0
    %1083 = vadd.xlane.f32.xlu0 %v1082
    %v1084 = vpop.xlane.xlu0 %1083
    %v1085 = vsel %vm663, %v1051, 0.0
    %1086 = vadd.xlane.f32.xlu0 %v1085
    %v1087 = vpop.xlane.xlu0 %1086
    %v1088 = vsel %vm663, %v1053, 0.0
    %1089 = vadd.xlane.f32.xlu0 %v1088
    %v1090 = vpop.xlane.xlu0 %1089
    %v1091 = vsel %vm663, %v1055, 0.0
    %1092 = vadd.xlane.f32.xlu0 %v1091
    %v1093 = vpop.xlane.xlu0 %1092
    %v1094 = vsel %vm663, %v1057, 0.0
    %1095 = vadd.xlane.f32.xlu0 %v1094
    %v1096 = vpop.xlane.xlu0 %1095
    %v1097 = vsel %vm834, %v1059, 0.0
    %1098 = vadd.xlane.f32.xlu0 %v1097
    %v1099 = vpop.xlane.xlu0 %1098
    %v1100 = vsel %vm663, %v1061, 0.0
    %1101 = vadd.xlane.f32.xlu0 %v1100
    %v1102 = vpop.xlane.xlu0 %1101
    %v1103 = vsel %vm663, %v1063, 0.0
    %1104 = vadd.xlane.f32.xlu0 %v1103
    %v1105 = vpop.xlane.xlu0 %1104
    %v1106 = vsel %vm663, %v1065, 0.0
    %1107 = vadd.xlane.f32.xlu0 %v1106
    %v1108 = vpop.xlane.xlu0 %1107
    %v1109 = vsel %vm663, %v1067, 0.0
    %1110 = vadd.xlane.f32.xlu0 %v1109
    %v1111 = vpop.xlane.xlu0 %1110
    %v1112 = vsel %vm663, %v1069, 0.0
    %1113 = vadd.xlane.f32.xlu0 %v1112
    %v1114 = vpop.xlane.xlu0 %1113
    %v1115 = vsel %vm663, %v1071, 0.0
    %1116 = vadd.xlane.f32.xlu0 %v1115
    %v1117 = vpop.xlane.xlu0 %1116
    %v1118 = vsel %vm663, %v1073, 0.0
    %1119 = vadd.xlane.f32.xlu0 %v1118
    %v1120 = vpop.xlane.xlu0 %1119
    %v1121 = vsel %vm834, %v1075, 0.0
    %1122 = vadd.xlane.f32.xlu0 %v1121
    %v1123 = vpop.xlane.xlu0 %1122
    %v1124 = vrcp.pop %v1078
    %v1125 = vrcp.pop %v1081
    %v1126 = vrcp.pop %v1084
    %v1127 = vrcp.pop %v1087
    %v1128 = vrcp.pop %v1090
    %v1129 = vrcp.pop %v1093
    %v1130 = vrcp.pop %v1096
    %v1131 = vrcp.pop %v1099
    %v1132 = vrcp.pop %v1102
    %v1133 = vrcp.pop %v1105
    %v1134 = vrcp.pop %v1108
    %v1135 = vrcp.pop %v1111
    %v1136 = vrcp.pop %v1114
    %v1137 = vrcp.pop %v1117
    %v1138 = vrcp.pop %v1120
    %v1139 = vrcp.pop %v1123
    %v1140 = vmul.f32 %v1045, %v1124
    %v1141 = vmul.f32 %v1047, %v1125
    %v1142 = vmul.f32 %v1049, %v1126
    %v1143 = vmul.f32 %v1051, %v1127
    %v1144 = vmul.f32 %v1053, %v1128
    %v1145 = vmul.f32 %v1055, %v1129
    %v1146 = vmul.f32 %v1057, %v1130
    %v1147 = vmul.f32 %v1059, %v1131
    %v1148 = vmul.f32 %v1061, %v1132
    %v1149 = vmul.f32 %v1063, %v1133
    %v1150 = vmul.f32 %v1065, %v1134
    %v1151 = vmul.f32 %v1067, %v1135
    %v1152 = vmul.f32 %v1069, %v1136
    %v1153 = vmul.f32 %v1071, %v1137
    %v1154 = vmul.f32 %v1073, %v1138
    %v1155 = vmul.f32 %v1075, %v1139
    %1156 = vst.msk [vmem:[%s8] sm:$0xff] %vm663, %v1140
    %1157 = vst.msk [vmem:[%s8 + $0x8] sm:$0xff] %vm663, %v1141
    %1158 = vst.msk [vmem:[%s8 + $0x10] sm:$0xff] %vm663, %v1142
    %1159 = vst.msk [vmem:[%s8 + $0x18] sm:$0xff] %vm663, %v1143
    %1160 = vst.msk [vmem:[%s8 + $0x20] sm:$0xff] %vm663, %v1144
    %1161 = vst.msk [vmem:[%s8 + $0x28] sm:$0xff] %vm663, %v1145
    %1162 = vst.msk [vmem:[%s8 + $0x30] sm:$0xff] %vm663, %v1146
    %1163 = vst.msk [vmem:[%s8 + $0x38] sm:$0xf] %vm834, %v1147
    %1164 = vst.msk [vmem:[%s8 + $0x40] sm:$0xff] %vm663, %v1148
    %1165 = vst.msk [vmem:[%s8 + $0x48] sm:$0xff] %vm663, %v1149
    %1166 = vst.msk [vmem:[%s8 + $0x50] sm:$0xff] %vm663, %v1150
    %1167 = vst.msk [vmem:[%s8 + $0x58] sm:$0xff] %vm663, %v1151
    %1168 = vst.msk [vmem:[%s8 + $0x60] sm:$0xff] %vm663, %v1152
    %1169 = vst.msk [vmem:[%s8 + $0x68] sm:$0xff] %vm663, %v1153
    %1170 = vst.msk [vmem:[%s8 + $0x70] sm:$0xff] %vm663, %v1154
    %1171 = vst.msk [vmem:[%s8 + $0x78] sm:$0xf] %vm834, %v1155
    // Predicated region
    $region38: #{tpu_custom_call.1} parent=1 // pred_check
      _
    $region39: #{tpu_custom_call.1} parent=1 // pred_check_branch
      %1173 = sbr.rel (0) target = $region41
    $region40: #{tpu_custom_call.1} parent=1 // pred_region
      _
    $region41: #{tpu_custom_call.1} parent=1 // pred_fallthru
      _
    // Predicated region
    $region42: #{tpu_custom_call.1} parent=1 // pred_check
      _
    $region43: #{tpu_custom_call.1} parent=1 // pred_check_branch
      %1175 = sbr.rel (0) target = $region45
    $region44: #{tpu_custom_call.1} parent=1 // pred_region
      _
    $region45: #{tpu_custom_call.1} parent=1 // pred_fallthru
      _
    %1176 = vsyncpa [#allocation3], 1

</llo_original>
